<compile_context>
chip_gen: v5e
topology: v5e:2x2
jax: 0.10.0
libtpu: 0.0.40
codegen_flags: <defaults>
</compile_context>

<pallas_src>
import jax
import jax.numpy as jnp
from jax.experimental import pallas as pl
from jax.experimental.pallas import tpu as pltpu


def _lstm_kernel(x_ref, yp_ref, emb_ref, wx_ref, we_ref, wh_ref, b_ref,
                 hseq_ref, c_ref):
    """One batch-tile, whole-sequence ConcatEmbedding LSTM in VMEM."""
    TB, T = x_ref.shape
    H = c_ref.shape[1]

    x_all = x_ref[...]          # [TB, T]
    yp_all = yp_ref[...]        # [TB, T]  (row t already holds y_{t-1})
    emb = emb_ref[...]          # [TB, E]
    wx = wx_ref[...]            # [2, 4H]  (rows: x_t, y_{t-1})
    we = we_ref[...]            # [E, 4H]
    wh = wh_ref[...]            # [H, 4H]
    b = b_ref[...]              # [1, 4H]

    # ---- Hoisted input projection (independent of the recurrent state) ----
    # Embedding + bias contribution is constant over time; the x / y_prev
    # contributions are computed for ALL timesteps up front (static slices,
    # no dynamic indexing, no selects) so they sit off the serial chain.
    emb_proj = jnp.dot(emb, we, preferred_element_type=jnp.float32) + b   # [TB,4H]
    wx0 = wx[0:1, :]
    wx1 = wx[1:2, :]
    z_pre = []
    for t in range(T):          # static T -> fully unrolled at trace time
        z_pre.append(x_all[:, t:t + 1] * wx0
                     + yp_all[:, t:t + 1] * wx1
                     + emb_proj)                                          # [TB,4H]

    # ---- Serial recurrence: one small MXU matmul + merged gates per step ---
    # Gate columns packed [forget | input | out | update]: one sigmoid launch
    # over 3H lanes, one tanh launch over H lanes (2 EUP ops instead of 5).
    h = jnp.zeros((TB, H), jnp.float32)
    c = jnp.zeros((TB, H), jnp.float32)
    hs = []
    for t in range(T):
        z = z_pre[t]
        if t > 0:               # h == 0 at t == 0: skip the dead matmul
            z = z + jnp.dot(h, wh, preferred_element_type=jnp.float32)
        s = jax.nn.sigmoid(z[:, :3 * H])
        g = jnp.tanh(z[:, 3 * H:])
        f = s[:, :H]
        i = s[:, H:2 * H]
        o = s[:, 2 * H:3 * H]
        c = c * f + i * g
        h = o * jnp.tanh(c)
        hs.append(h)

    # Single batched store of the whole hidden-state sequence (no per-step
    # masked [TB, H] stores), plus the final cell state.
    hseq_ref[...] = jnp.stack(hs, axis=0)     # [T, TB, H]
    c_ref[...] = c


def _round_up(n, m):
    return ((n + m - 1) // m) * m


@jax.jit
def embedding_lstm_forward(x, subject_id, y, params):
    """Returns (h_seq [B, H, T], c_final [B, H]) like the PyTorch forward."""
    x = x.astype(jnp.float32)
    y = y.astype(jnp.float32)
    emb = params["embedding_table"][subject_id]            # [B, E] (glue lookup)
    wx, we, wh, b = params["wx"], params["we"], params["wh"], params["b"]
    B, T = x.shape
    E = we.shape[0]
    H = wh.shape[0]
    H4 = wh.shape[1]

    # Pre-shift y in the wrapper: y_prev[:, t] = y[:, t-1], y_prev[:, 0] = 0.
    y_prev = jnp.concatenate([jnp.zeros((B, 1), jnp.float32), y[:, :-1]], axis=1)

    # Pad batch to a sublane/MXU-friendly tile and grid over batch tiles.
    if B <= 128:
        TB = _round_up(B, 8)
        B_pad = TB
    else:
        TB = 128
        B_pad = _round_up(B, 128)
    pad = B_pad - B
    xp = jnp.pad(x, ((0, pad), (0, 0)))
    ypp = jnp.pad(y_prev, ((0, pad), (0, 0)))
    embp = jnp.pad(emb, ((0, pad), (0, 0)))
    nb = B_pad // TB

    hseq, c = pl.pallas_call(
        _lstm_kernel,
        out_shape=(jax.ShapeDtypeStruct((T, B_pad, H), jnp.float32),
                   jax.ShapeDtypeStruct((B_pad, H), jnp.float32)),
        grid=(nb,),
        in_specs=[
            pl.BlockSpec((TB, T), lambda i: (i, 0)),    # x
            pl.BlockSpec((TB, T), lambda i: (i, 0)),    # y_prev
            pl.BlockSpec((TB, E), lambda i: (i, 0)),    # embedding vectors
            pl.BlockSpec((2, H4), lambda i: (0, 0)),    # wx
            pl.BlockSpec((E, H4), lambda i: (0, 0)),    # we
            pl.BlockSpec((H, H4), lambda i: (0, 0)),    # wh
            pl.BlockSpec((1, H4), lambda i: (0, 0)),    # bias
        ],
        out_specs=(
            pl.BlockSpec((T, TB, H), lambda i: (0, i, 0)),
            pl.BlockSpec((TB, H), lambda i: (i, 0)),
        ),
        compiler_params=pltpu.CompilerParams(
            dimension_semantics=("parallel",)),
    )(xp, ypp, embp, wx, we, wh, b)

    hseq = hseq[:, :B, :]                               # drop batch padding
    c = c[:B]
    # Match torch.stack(inner_cell_out, dim=-1): [B, H, T].  (Tiny transpose,
    # kept outside the kernel purely for module-output parity.)
    return jnp.transpose(hseq, (1, 2, 0)), c


def init_params(key, hidden_size, embedding_size, n_subjects, input_size=2):
    """Synthetic parameters.

    Gate weight columns are packed [forget | input | out | update] (sigmoid
    gates first, tanh gate last) and pre-transposed to [fan_in, 4*hidden].
    Real PyTorch checkpoints (one nn.Linear per gate) must be permuted into
    this column order before use.
    """
    D = input_size + embedding_size + hidden_size          # gate fan-in
    k_w, k_b, k_e = jax.random.split(key, 3)
    bound = 1.0 / float(D) ** 0.5
    W = jax.random.uniform(k_w, (D, 4 * hidden_size), jnp.float32, -bound, bound)
    b = jax.random.uniform(k_b, (1, 4 * hidden_size), jnp.float32, -bound, bound)
    table = jax.random.normal(k_e, (n_subjects, embedding_size), jnp.float32)
    return dict(
        wx=W[0:input_size],                                  # [2, 4H]
        we=W[input_size:input_size + embedding_size],        # [E, 4H]
        wh=W[input_size + embedding_size:],                  # [H, 4H]
        b=b,                                                 # [1, 4H]
        embedding_table=table,                               # [n_subjects, E]
    )


def reference_forward(x, subject_id, y, params):
    """Pure-JAX reference of the same forward pass (for validation)."""
    emb = params["embedding_table"][subject_id]
    wx, we, wh, b = params["wx"], params["we"], params["wh"], params["b"]
    B, T = x.shape
    H = wh.shape[0]
    h = jnp.zeros((B, H), jnp.float32)
    c = jnp.zeros((B, H), jnp.float32)
    emb_proj = emb @ we + b
    hs = []
    for t in range(T):
        x_t = x[:, t:t + 1]
        y_prev = y[:, t - 1:t] if t > 0 else jnp.zeros((B, 1), jnp.float32)
        z = x_t * wx[0:1] + y_prev * wx[1:2] + h @ wh + emb_proj
        f = jax.nn.sigmoid(z[:, :H])
        i = jax.nn.sigmoid(z[:, H:2 * H])
        o = jax.nn.sigmoid(z[:, 2 * H:3 * H])
        g = jnp.tanh(z[:, 3 * H:])
        c = c * f + i * g
        h = o * jnp.tanh(c)
        hs.append(h)
    return jnp.stack(hs, axis=-1), c


if __name__ == "__main__":
    B, T, H, E, N_SUBJ = 2, 8, 32, 8, 5

    key = jax.random.PRNGKey(0)
    kx, ky, kp = jax.random.split(key, 3)
    x = jax.random.normal(kx, (B, T), jnp.float32)
    y = jax.random.normal(ky, (B, T), jnp.float32)
    subject_id = jnp.array([0, 3], dtype=jnp.int32)
    params = init_params(kp, hidden_size=H, embedding_size=E, n_subjects=N_SUBJ)

    h_seq, c_final = embedding_lstm_forward(x, subject_id, y, params)
    jax.block_until_ready((h_seq, c_final))

    h_ref, c_ref_val = reference_forward(x, subject_id, y, params)
    assert h_seq.shape == (B, H, T) and c_final.shape == (B, H)
    assert jnp.allclose(h_seq, h_ref, atol=2e-3, rtol=2e-3)
    assert jnp.allclose(c_final, c_ref_val, atol=2e-3, rtol=2e-3)

    print("KERNEL_OK")
</pallas_src>

<mosaic_0001>
module attributes {stable_mosaic.version = 11 : i64} {
  func.func @_lstm_kernel(%arg0: i32, %arg1: memref<8x8xf32, #tpu.memory_space<vmem>>, %arg2: memref<8x8xf32, #tpu.memory_space<vmem>>, %arg3: memref<8x8xf32, #tpu.memory_space<vmem>>, %arg4: memref<2x128xf32, #tpu.memory_space<vmem>>, %arg5: memref<8x128xf32, #tpu.memory_space<vmem>>, %arg6: memref<32x128xf32, #tpu.memory_space<vmem>>, %arg7: memref<1x128xf32, #tpu.memory_space<vmem>>, %arg8: memref<8x8x32xf32, #tpu.memory_space<vmem>>, %arg9: memref<8x32xf32, #tpu.memory_space<vmem>>) attributes {dimension_semantics = [#tpu.dimension_semantics<parallel>], iteration_bounds = array<i64: 1>, scalar_prefetch = 0 : i64, scratch_operands = 0 : i64, tpu.core_type = #tpu.core_type<tc>, window_params = [{transform_indices = @transform_0, window_bounds = array<i64: 8, 8>}, {transform_indices = @transform_1, window_bounds = array<i64: 8, 8>}, {transform_indices = @transform_2, window_bounds = array<i64: 8, 8>}, {pipeline_mode = #tpu.pipeline_mode<synchronous>, transform_indices = @transform_3, window_bounds = array<i64: 2, 128>}, {pipeline_mode = #tpu.pipeline_mode<synchronous>, transform_indices = @transform_4, window_bounds = array<i64: 8, 128>}, {pipeline_mode = #tpu.pipeline_mode<synchronous>, transform_indices = @transform_5, window_bounds = array<i64: 32, 128>}, {pipeline_mode = #tpu.pipeline_mode<synchronous>, transform_indices = @transform_6, window_bounds = array<i64: 1, 128>}, {transform_indices = @transform_7, window_bounds = array<i64: 8, 8, 32>}, {transform_indices = @transform_8, window_bounds = array<i64: 8, 32>}]} {
    %c0 = arith.constant 0 : index
    %c0_0 = arith.constant 0 : index
    %0 = vector.load %arg1[%c0, %c0_0] : memref<8x8xf32, #tpu.memory_space<vmem>>, vector<8x8xf32>
    %c0_1 = arith.constant 0 : index
    %c0_2 = arith.constant 0 : index
    %1 = vector.load %arg2[%c0_1, %c0_2] : memref<8x8xf32, #tpu.memory_space<vmem>>, vector<8x8xf32>
    %c0_3 = arith.constant 0 : index
    %c0_4 = arith.constant 0 : index
    %2 = vector.load %arg3[%c0_3, %c0_4] : memref<8x8xf32, #tpu.memory_space<vmem>>, vector<8x8xf32>
    %c0_5 = arith.constant 0 : index
    %c0_6 = arith.constant 0 : index
    %3 = vector.load %arg4[%c0_5, %c0_6] : memref<2x128xf32, #tpu.memory_space<vmem>>, vector<2x128xf32>
    %c0_7 = arith.constant 0 : index
    %c0_8 = arith.constant 0 : index
    %4 = vector.load %arg5[%c0_7, %c0_8] : memref<8x128xf32, #tpu.memory_space<vmem>>, vector<8x128xf32>
    %c0_9 = arith.constant 0 : index
    %c0_10 = arith.constant 0 : index
    %5 = vector.load %arg6[%c0_9, %c0_10] : memref<32x128xf32, #tpu.memory_space<vmem>>, vector<32x128xf32>
    %c0_11 = arith.constant 0 : index
    %c0_12 = arith.constant 0 : index
    %6 = vector.load %arg7[%c0_11, %c0_12] : memref<1x128xf32, #tpu.memory_space<vmem>>, vector<1x128xf32>
    %cst = arith.constant dense<0.000000e+00> : vector<8x128xf32>
    %7 = tpu.matmul %2, %4, %cst {dimension_numbers = #tpu.dot_dimension_numbers<[1], [0], [0], [1], [0, 0, 1, 1], [], []>} : vector<8x8xf32>, vector<8x128xf32>, vector<8x128xf32> -> vector<8x128xf32>
    %8 = vector.broadcast %6 : vector<1x128xf32> to vector<8x128xf32>
    %9 = arith.addf %7, %8 : vector<8x128xf32>
    %10 = vector.extract_strided_slice %3 {offsets = [0, 0], sizes = [1, 128], strides = [1, 1]} : vector<2x128xf32> to vector<1x128xf32>
    %11 = vector.extract_strided_slice %3 {offsets = [1, 0], sizes = [1, 128], strides = [1, 1]} : vector<2x128xf32> to vector<1x128xf32>
    %12 = vector.extract_strided_slice %0 {offsets = [0, 0], sizes = [8, 1], strides = [1, 1]} : vector<8x8xf32> to vector<8x1xf32>
    %13 = vector.broadcast %12 : vector<8x1xf32> to vector<8x128xf32>
    %14 = vector.broadcast %10 : vector<1x128xf32> to vector<8x128xf32>
    %15 = arith.mulf %13, %14 : vector<8x128xf32>
    %16 = vector.extract_strided_slice %1 {offsets = [0, 0], sizes = [8, 1], strides = [1, 1]} : vector<8x8xf32> to vector<8x1xf32>
    %17 = vector.broadcast %16 : vector<8x1xf32> to vector<8x128xf32>
    %18 = vector.broadcast %11 : vector<1x128xf32> to vector<8x128xf32>
    %19 = arith.mulf %17, %18 : vector<8x128xf32>
    %20 = arith.addf %15, %19 : vector<8x128xf32>
    %21 = arith.addf %20, %9 : vector<8x128xf32>
    %22 = vector.extract_strided_slice %0 {offsets = [0, 1], sizes = [8, 1], strides = [1, 1]} : vector<8x8xf32> to vector<8x1xf32>
    %23 = vector.broadcast %22 : vector<8x1xf32> to vector<8x128xf32>
    %24 = vector.broadcast %10 : vector<1x128xf32> to vector<8x128xf32>
    %25 = arith.mulf %23, %24 : vector<8x128xf32>
    %26 = vector.extract_strided_slice %1 {offsets = [0, 1], sizes = [8, 1], strides = [1, 1]} : vector<8x8xf32> to vector<8x1xf32>
    %27 = vector.broadcast %26 : vector<8x1xf32> to vector<8x128xf32>
    %28 = vector.broadcast %11 : vector<1x128xf32> to vector<8x128xf32>
    %29 = arith.mulf %27, %28 : vector<8x128xf32>
    %30 = arith.addf %25, %29 : vector<8x128xf32>
    %31 = arith.addf %30, %9 : vector<8x128xf32>
    %32 = vector.extract_strided_slice %0 {offsets = [0, 2], sizes = [8, 1], strides = [1, 1]} : vector<8x8xf32> to vector<8x1xf32>
    %33 = vector.broadcast %32 : vector<8x1xf32> to vector<8x128xf32>
    %34 = vector.broadcast %10 : vector<1x128xf32> to vector<8x128xf32>
    %35 = arith.mulf %33, %34 : vector<8x128xf32>
    %36 = vector.extract_strided_slice %1 {offsets = [0, 2], sizes = [8, 1], strides = [1, 1]} : vector<8x8xf32> to vector<8x1xf32>
    %37 = vector.broadcast %36 : vector<8x1xf32> to vector<8x128xf32>
    %38 = vector.broadcast %11 : vector<1x128xf32> to vector<8x128xf32>
    %39 = arith.mulf %37, %38 : vector<8x128xf32>
    %40 = arith.addf %35, %39 : vector<8x128xf32>
    %41 = arith.addf %40, %9 : vector<8x128xf32>
    %42 = vector.extract_strided_slice %0 {offsets = [0, 3], sizes = [8, 1], strides = [1, 1]} : vector<8x8xf32> to vector<8x1xf32>
    %43 = vector.broadcast %42 : vector<8x1xf32> to vector<8x128xf32>
    %44 = vector.broadcast %10 : vector<1x128xf32> to vector<8x128xf32>
    %45 = arith.mulf %43, %44 : vector<8x128xf32>
    %46 = vector.extract_strided_slice %1 {offsets = [0, 3], sizes = [8, 1], strides = [1, 1]} : vector<8x8xf32> to vector<8x1xf32>
    %47 = vector.broadcast %46 : vector<8x1xf32> to vector<8x128xf32>
    %48 = vector.broadcast %11 : vector<1x128xf32> to vector<8x128xf32>
    %49 = arith.mulf %47, %48 : vector<8x128xf32>
    %50 = arith.addf %45, %49 : vector<8x128xf32>
    %51 = arith.addf %50, %9 : vector<8x128xf32>
    %52 = vector.extract_strided_slice %0 {offsets = [0, 4], sizes = [8, 1], strides = [1, 1]} : vector<8x8xf32> to vector<8x1xf32>
    %53 = vector.broadcast %52 : vector<8x1xf32> to vector<8x128xf32>
    %54 = vector.broadcast %10 : vector<1x128xf32> to vector<8x128xf32>
    %55 = arith.mulf %53, %54 : vector<8x128xf32>
    %56 = vector.extract_strided_slice %1 {offsets = [0, 4], sizes = [8, 1], strides = [1, 1]} : vector<8x8xf32> to vector<8x1xf32>
    %57 = vector.broadcast %56 : vector<8x1xf32> to vector<8x128xf32>
    %58 = vector.broadcast %11 : vector<1x128xf32> to vector<8x128xf32>
    %59 = arith.mulf %57, %58 : vector<8x128xf32>
    %60 = arith.addf %55, %59 : vector<8x128xf32>
    %61 = arith.addf %60, %9 : vector<8x128xf32>
    %62 = vector.extract_strided_slice %0 {offsets = [0, 5], sizes = [8, 1], strides = [1, 1]} : vector<8x8xf32> to vector<8x1xf32>
    %63 = vector.broadcast %62 : vector<8x1xf32> to vector<8x128xf32>
    %64 = vector.broadcast %10 : vector<1x128xf32> to vector<8x128xf32>
    %65 = arith.mulf %63, %64 : vector<8x128xf32>
    %66 = vector.extract_strided_slice %1 {offsets = [0, 5], sizes = [8, 1], strides = [1, 1]} : vector<8x8xf32> to vector<8x1xf32>
    %67 = vector.broadcast %66 : vector<8x1xf32> to vector<8x128xf32>
    %68 = vector.broadcast %11 : vector<1x128xf32> to vector<8x128xf32>
    %69 = arith.mulf %67, %68 : vector<8x128xf32>
    %70 = arith.addf %65, %69 : vector<8x128xf32>
    %71 = arith.addf %70, %9 : vector<8x128xf32>
    %72 = vector.extract_strided_slice %0 {offsets = [0, 6], sizes = [8, 1], strides = [1, 1]} : vector<8x8xf32> to vector<8x1xf32>
    %73 = vector.broadcast %72 : vector<8x1xf32> to vector<8x128xf32>
    %74 = vector.broadcast %10 : vector<1x128xf32> to vector<8x128xf32>
    %75 = arith.mulf %73, %74 : vector<8x128xf32>
    %76 = vector.extract_strided_slice %1 {offsets = [0, 6], sizes = [8, 1], strides = [1, 1]} : vector<8x8xf32> to vector<8x1xf32>
    %77 = vector.broadcast %76 : vector<8x1xf32> to vector<8x128xf32>
    %78 = vector.broadcast %11 : vector<1x128xf32> to vector<8x128xf32>
    %79 = arith.mulf %77, %78 : vector<8x128xf32>
    %80 = arith.addf %75, %79 : vector<8x128xf32>
    %81 = arith.addf %80, %9 : vector<8x128xf32>
    %82 = vector.extract_strided_slice %0 {offsets = [0, 7], sizes = [8, 1], strides = [1, 1]} : vector<8x8xf32> to vector<8x1xf32>
    %83 = vector.broadcast %82 : vector<8x1xf32> to vector<8x128xf32>
    %84 = vector.broadcast %10 : vector<1x128xf32> to vector<8x128xf32>
    %85 = arith.mulf %83, %84 : vector<8x128xf32>
    %86 = vector.extract_strided_slice %1 {offsets = [0, 7], sizes = [8, 1], strides = [1, 1]} : vector<8x8xf32> to vector<8x1xf32>
    %87 = vector.broadcast %86 : vector<8x1xf32> to vector<8x128xf32>
    %88 = vector.broadcast %11 : vector<1x128xf32> to vector<8x128xf32>
    %89 = arith.mulf %87, %88 : vector<8x128xf32>
    %90 = arith.addf %85, %89 : vector<8x128xf32>
    %91 = arith.addf %90, %9 : vector<8x128xf32>
    %cst_13 = arith.constant 0.000000e+00 : f32
    %92 = vector.broadcast %cst_13 : f32 to vector<8x32xf32>
    %93 = vector.extract_strided_slice %21 {offsets = [0, 0], sizes = [8, 96], strides = [1, 1]} : vector<8x128xf32> to vector<8x96xf32>
    %94 = arith.negf %93 : vector<8x96xf32>
    %95 = math.exp %94 : vector<8x96xf32>
    %cst_14 = arith.constant 1.000000e+00 : f32
    %96 = vector.broadcast %cst_14 : f32 to vector<8x96xf32>
    %97 = arith.addf %96, %95 : vector<8x96xf32>
    %98 = arith.divf %96, %97 : vector<8x96xf32>
    %99 = vector.extract_strided_slice %21 {offsets = [0, 96], sizes = [8, 32], strides = [1, 1]} : vector<8x128xf32> to vector<8x32xf32>
    %100 = math.tanh %99 : vector<8x32xf32>
    %101 = vector.extract_strided_slice %98 {offsets = [0, 0], sizes = [8, 32], strides = [1, 1]} : vector<8x96xf32> to vector<8x32xf32>
    %102 = vector.extract_strided_slice %98 {offsets = [0, 32], sizes = [8, 32], strides = [1, 1]} : vector<8x96xf32> to vector<8x32xf32>
    %103 = vector.extract_strided_slice %98 {offsets = [0, 64], sizes = [8, 32], strides = [1, 1]} : vector<8x96xf32> to vector<8x32xf32>
    %104 = arith.mulf %92, %101 : vector<8x32xf32>
    %105 = arith.mulf %102, %100 : vector<8x32xf32>
    %106 = arith.addf %104, %105 : vector<8x32xf32>
    %107 = math.tanh %106 : vector<8x32xf32>
    %108 = arith.mulf %103, %107 : vector<8x32xf32>
    %cst_15 = arith.constant dense<0.000000e+00> : vector<8x128xf32>
    %109 = tpu.matmul %108, %5, %cst_15 {dimension_numbers = #tpu.dot_dimension_numbers<[1], [0], [0], [1], [0, 0, 1, 1], [], []>} : vector<8x32xf32>, vector<32x128xf32>, vector<8x128xf32> -> vector<8x128xf32>
    %110 = arith.addf %31, %109 : vector<8x128xf32>
    %111 = vector.extract_strided_slice %110 {offsets = [0, 0], sizes = [8, 96], strides = [1, 1]} : vector<8x128xf32> to vector<8x96xf32>
    %112 = arith.negf %111 : vector<8x96xf32>
    %113 = math.exp %112 : vector<8x96xf32>
    %cst_16 = arith.constant 1.000000e+00 : f32
    %114 = vector.broadcast %cst_16 : f32 to vector<8x96xf32>
    %115 = arith.addf %114, %113 : vector<8x96xf32>
    %116 = arith.divf %114, %115 : vector<8x96xf32>
    %117 = vector.extract_strided_slice %110 {offsets = [0, 96], sizes = [8, 32], strides = [1, 1]} : vector<8x128xf32> to vector<8x32xf32>
    %118 = math.tanh %117 : vector<8x32xf32>
    %119 = vector.extract_strided_slice %116 {offsets = [0, 0], sizes = [8, 32], strides = [1, 1]} : vector<8x96xf32> to vector<8x32xf32>
    %120 = vector.extract_strided_slice %116 {offsets = [0, 32], sizes = [8, 32], strides = [1, 1]} : vector<8x96xf32> to vector<8x32xf32>
    %121 = vector.extract_strided_slice %116 {offsets = [0, 64], sizes = [8, 32], strides = [1, 1]} : vector<8x96xf32> to vector<8x32xf32>
    %122 = arith.mulf %106, %119 : vector<8x32xf32>
    %123 = arith.mulf %120, %118 : vector<8x32xf32>
    %124 = arith.addf %122, %123 : vector<8x32xf32>
    %125 = math.tanh %124 : vector<8x32xf32>
    %126 = arith.mulf %121, %125 : vector<8x32xf32>
    %cst_17 = arith.constant dense<0.000000e+00> : vector<8x128xf32>
    %127 = tpu.matmul %126, %5, %cst_17 {dimension_numbers = #tpu.dot_dimension_numbers<[1], [0], [0], [1], [0, 0, 1, 1], [], []>} : vector<8x32xf32>, vector<32x128xf32>, vector<8x128xf32> -> vector<8x128xf32>
    %128 = arith.addf %41, %127 : vector<8x128xf32>
    %129 = vector.extract_strided_slice %128 {offsets = [0, 0], sizes = [8, 96], strides = [1, 1]} : vector<8x128xf32> to vector<8x96xf32>
    %130 = arith.negf %129 : vector<8x96xf32>
    %131 = math.exp %130 : vector<8x96xf32>
    %cst_18 = arith.constant 1.000000e+00 : f32
    %132 = vector.broadcast %cst_18 : f32 to vector<8x96xf32>
    %133 = arith.addf %132, %131 : vector<8x96xf32>
    %134 = arith.divf %132, %133 : vector<8x96xf32>
    %135 = vector.extract_strided_slice %128 {offsets = [0, 96], sizes = [8, 32], strides = [1, 1]} : vector<8x128xf32> to vector<8x32xf32>
    %136 = math.tanh %135 : vector<8x32xf32>
    %137 = vector.extract_strided_slice %134 {offsets = [0, 0], sizes = [8, 32], strides = [1, 1]} : vector<8x96xf32> to vector<8x32xf32>
    %138 = vector.extract_strided_slice %134 {offsets = [0, 32], sizes = [8, 32], strides = [1, 1]} : vector<8x96xf32> to vector<8x32xf32>
    %139 = vector.extract_strided_slice %134 {offsets = [0, 64], sizes = [8, 32], strides = [1, 1]} : vector<8x96xf32> to vector<8x32xf32>
    %140 = arith.mulf %124, %137 : vector<8x32xf32>
    %141 = arith.mulf %138, %136 : vector<8x32xf32>
    %142 = arith.addf %140, %141 : vector<8x32xf32>
    %143 = math.tanh %142 : vector<8x32xf32>
    %144 = arith.mulf %139, %143 : vector<8x32xf32>
    %cst_19 = arith.constant dense<0.000000e+00> : vector<8x128xf32>
    %145 = tpu.matmul %144, %5, %cst_19 {dimension_numbers = #tpu.dot_dimension_numbers<[1], [0], [0], [1], [0, 0, 1, 1], [], []>} : vector<8x32xf32>, vector<32x128xf32>, vector<8x128xf32> -> vector<8x128xf32>
    %146 = arith.addf %51, %145 : vector<8x128xf32>
    %147 = vector.extract_strided_slice %146 {offsets = [0, 0], sizes = [8, 96], strides = [1, 1]} : vector<8x128xf32> to vector<8x96xf32>
    %148 = arith.negf %147 : vector<8x96xf32>
    %149 = math.exp %148 : vector<8x96xf32>
    %cst_20 = arith.constant 1.000000e+00 : f32
    %150 = vector.broadcast %cst_20 : f32 to vector<8x96xf32>
    %151 = arith.addf %150, %149 : vector<8x96xf32>
    %152 = arith.divf %150, %151 : vector<8x96xf32>
    %153 = vector.extract_strided_slice %146 {offsets = [0, 96], sizes = [8, 32], strides = [1, 1]} : vector<8x128xf32> to vector<8x32xf32>
    %154 = math.tanh %153 : vector<8x32xf32>
    %155 = vector.extract_strided_slice %152 {offsets = [0, 0], sizes = [8, 32], strides = [1, 1]} : vector<8x96xf32> to vector<8x32xf32>
    %156 = vector.extract_strided_slice %152 {offsets = [0, 32], sizes = [8, 32], strides = [1, 1]} : vector<8x96xf32> to vector<8x32xf32>
    %157 = vector.extract_strided_slice %152 {offsets = [0, 64], sizes = [8, 32], strides = [1, 1]} : vector<8x96xf32> to vector<8x32xf32>
    %158 = arith.mulf %142, %155 : vector<8x32xf32>
    %159 = arith.mulf %156, %154 : vector<8x32xf32>
    %160 = arith.addf %158, %159 : vector<8x32xf32>
    %161 = math.tanh %160 : vector<8x32xf32>
    %162 = arith.mulf %157, %161 : vector<8x32xf32>
    %cst_21 = arith.constant dense<0.000000e+00> : vector<8x128xf32>
    %163 = tpu.matmul %162, %5, %cst_21 {dimension_numbers = #tpu.dot_dimension_numbers<[1], [0], [0], [1], [0, 0, 1, 1], [], []>} : vector<8x32xf32>, vector<32x128xf32>, vector<8x128xf32> -> vector<8x128xf32>
    %164 = arith.addf %61, %163 : vector<8x128xf32>
    %165 = vector.extract_strided_slice %164 {offsets = [0, 0], sizes = [8, 96], strides = [1, 1]} : vector<8x128xf32> to vector<8x96xf32>
    %166 = arith.negf %165 : vector<8x96xf32>
    %167 = math.exp %166 : vector<8x96xf32>
    %cst_22 = arith.constant 1.000000e+00 : f32
    %168 = vector.broadcast %cst_22 : f32 to vector<8x96xf32>
    %169 = arith.addf %168, %167 : vector<8x96xf32>
    %170 = arith.divf %168, %169 : vector<8x96xf32>
    %171 = vector.extract_strided_slice %164 {offsets = [0, 96], sizes = [8, 32], strides = [1, 1]} : vector<8x128xf32> to vector<8x32xf32>
    %172 = math.tanh %171 : vector<8x32xf32>
    %173 = vector.extract_strided_slice %170 {offsets = [0, 0], sizes = [8, 32], strides = [1, 1]} : vector<8x96xf32> to vector<8x32xf32>
    %174 = vector.extract_strided_slice %170 {offsets = [0, 32], sizes = [8, 32], strides = [1, 1]} : vector<8x96xf32> to vector<8x32xf32>
    %175 = vector.extract_strided_slice %170 {offsets = [0, 64], sizes = [8, 32], strides = [1, 1]} : vector<8x96xf32> to vector<8x32xf32>
    %176 = arith.mulf %160, %173 : vector<8x32xf32>
    %177 = arith.mulf %174, %172 : vector<8x32xf32>
    %178 = arith.addf %176, %177 : vector<8x32xf32>
    %179 = math.tanh %178 : vector<8x32xf32>
    %180 = arith.mulf %175, %179 : vector<8x32xf32>
    %cst_23 = arith.constant dense<0.000000e+00> : vector<8x128xf32>
    %181 = tpu.matmul %180, %5, %cst_23 {dimension_numbers = #tpu.dot_dimension_numbers<[1], [0], [0], [1], [0, 0, 1, 1], [], []>} : vector<8x32xf32>, vector<32x128xf32>, vector<8x128xf32> -> vector<8x128xf32>
    %182 = arith.addf %71, %181 : vector<8x128xf32>
    %183 = vector.extract_strided_slice %182 {offsets = [0, 0], sizes = [8, 96], strides = [1, 1]} : vector<8x128xf32> to vector<8x96xf32>
    %184 = arith.negf %183 : vector<8x96xf32>
    %185 = math.exp %184 : vector<8x96xf32>
    %cst_24 = arith.constant 1.000000e+00 : f32
    %186 = vector.broadcast %cst_24 : f32 to vector<8x96xf32>
    %187 = arith.addf %186, %185 : vector<8x96xf32>
    %188 = arith.divf %186, %187 : vector<8x96xf32>
    %189 = vector.extract_strided_slice %182 {offsets = [0, 96], sizes = [8, 32], strides = [1, 1]} : vector<8x128xf32> to vector<8x32xf32>
    %190 = math.tanh %189 : vector<8x32xf32>
    %191 = vector.extract_strided_slice %188 {offsets = [0, 0], sizes = [8, 32], strides = [1, 1]} : vector<8x96xf32> to vector<8x32xf32>
    %192 = vector.extract_strided_slice %188 {offsets = [0, 32], sizes = [8, 32], strides = [1, 1]} : vector<8x96xf32> to vector<8x32xf32>
    %193 = vector.extract_strided_slice %188 {offsets = [0, 64], sizes = [8, 32], strides = [1, 1]} : vector<8x96xf32> to vector<8x32xf32>
    %194 = arith.mulf %178, %191 : vector<8x32xf32>
    %195 = arith.mulf %192, %190 : vector<8x32xf32>
    %196 = arith.addf %194, %195 : vector<8x32xf32>
    %197 = math.tanh %196 : vector<8x32xf32>
    %198 = arith.mulf %193, %197 : vector<8x32xf32>
    %cst_25 = arith.constant dense<0.000000e+00> : vector<8x128xf32>
    %199 = tpu.matmul %198, %5, %cst_25 {dimension_numbers = #tpu.dot_dimension_numbers<[1], [0], [0], [1], [0, 0, 1, 1], [], []>} : vector<8x32xf32>, vector<32x128xf32>, vector<8x128xf32> -> vector<8x128xf32>
    %200 = arith.addf %81, %199 : vector<8x128xf32>
    %201 = vector.extract_strided_slice %200 {offsets = [0, 0], sizes = [8, 96], strides = [1, 1]} : vector<8x128xf32> to vector<8x96xf32>
    %202 = arith.negf %201 : vector<8x96xf32>
    %203 = math.exp %202 : vector<8x96xf32>
    %cst_26 = arith.constant 1.000000e+00 : f32
    %204 = vector.broadcast %cst_26 : f32 to vector<8x96xf32>
    %205 = arith.addf %204, %203 : vector<8x96xf32>
    %206 = arith.divf %204, %205 : vector<8x96xf32>
    %207 = vector.extract_strided_slice %200 {offsets = [0, 96], sizes = [8, 32], strides = [1, 1]} : vector<8x128xf32> to vector<8x32xf32>
    %208 = math.tanh %207 : vector<8x32xf32>
    %209 = vector.extract_strided_slice %206 {offsets = [0, 0], sizes = [8, 32], strides = [1, 1]} : vector<8x96xf32> to vector<8x32xf32>
    %210 = vector.extract_strided_slice %206 {offsets = [0, 32], sizes = [8, 32], strides = [1, 1]} : vector<8x96xf32> to vector<8x32xf32>
    %211 = vector.extract_strided_slice %206 {offsets = [0, 64], sizes = [8, 32], strides = [1, 1]} : vector<8x96xf32> to vector<8x32xf32>
    %212 = arith.mulf %196, %209 : vector<8x32xf32>
    %213 = arith.mulf %210, %208 : vector<8x32xf32>
    %214 = arith.addf %212, %213 : vector<8x32xf32>
    %215 = math.tanh %214 : vector<8x32xf32>
    %216 = arith.mulf %211, %215 : vector<8x32xf32>
    %cst_27 = arith.constant dense<0.000000e+00> : vector<8x128xf32>
    %217 = tpu.matmul %216, %5, %cst_27 {dimension_numbers = #tpu.dot_dimension_numbers<[1], [0], [0], [1], [0, 0, 1, 1], [], []>} : vector<8x32xf32>, vector<32x128xf32>, vector<8x128xf32> -> vector<8x128xf32>
    %218 = arith.addf %91, %217 : vector<8x128xf32>
    %219 = vector.extract_strided_slice %218 {offsets = [0, 0], sizes = [8, 96], strides = [1, 1]} : vector<8x128xf32> to vector<8x96xf32>
    %220 = arith.negf %219 : vector<8x96xf32>
    %221 = math.exp %220 : vector<8x96xf32>
    %cst_28 = arith.constant 1.000000e+00 : f32
    %222 = vector.broadcast %cst_28 : f32 to vector<8x96xf32>
    %223 = arith.addf %222, %221 : vector<8x96xf32>
    %224 = arith.divf %222, %223 : vector<8x96xf32>
    %225 = vector.extract_strided_slice %218 {offsets = [0, 96], sizes = [8, 32], strides = [1, 1]} : vector<8x128xf32> to vector<8x32xf32>
    %226 = math.tanh %225 : vector<8x32xf32>
    %227 = vector.extract_strided_slice %224 {offsets = [0, 0], sizes = [8, 32], strides = [1, 1]} : vector<8x96xf32> to vector<8x32xf32>
    %228 = vector.extract_strided_slice %224 {offsets = [0, 32], sizes = [8, 32], strides = [1, 1]} : vector<8x96xf32> to vector<8x32xf32>
    %229 = vector.extract_strided_slice %224 {offsets = [0, 64], sizes = [8, 32], strides = [1, 1]} : vector<8x96xf32> to vector<8x32xf32>
    %230 = arith.mulf %214, %227 : vector<8x32xf32>
    %231 = arith.mulf %228, %226 : vector<8x32xf32>
    %232 = arith.addf %230, %231 : vector<8x32xf32>
    %233 = math.tanh %232 : vector<8x32xf32>
    %234 = arith.mulf %229, %233 : vector<8x32xf32>
    %235 = vector.shape_cast %108 : vector<8x32xf32> to vector<1x8x32xf32>
    %236 = vector.shape_cast %126 : vector<8x32xf32> to vector<1x8x32xf32>
    %237 = vector.shape_cast %144 : vector<8x32xf32> to vector<1x8x32xf32>
    %238 = vector.shape_cast %162 : vector<8x32xf32> to vector<1x8x32xf32>
    %239 = vector.shape_cast %180 : vector<8x32xf32> to vector<1x8x32xf32>
    %240 = vector.shape_cast %198 : vector<8x32xf32> to vector<1x8x32xf32>
    %241 = vector.shape_cast %216 : vector<8x32xf32> to vector<1x8x32xf32>
    %242 = vector.shape_cast %234 : vector<8x32xf32> to vector<1x8x32xf32>
    %243 = tpu.concatenate %235, %236, %237, %238, %239, %240, %241, %242 in 0 : vector<1x8x32xf32>, vector<1x8x32xf32>, vector<1x8x32xf32>, vector<1x8x32xf32>, vector<1x8x32xf32>, vector<1x8x32xf32>, vector<1x8x32xf32>, vector<1x8x32xf32> -> vector<8x8x32xf32>
    %c0_29 = arith.constant 0 : index
    %c0_30 = arith.constant 0 : index
    %c0_31 = arith.constant 0 : index
    %244 = vector.load %arg8[%c0_29, %c0_30, %c0_31] : memref<8x8x32xf32, #tpu.memory_space<vmem>>, vector<8x8x32xf32>
    tpu.vector_store %arg8[%c0_29, %c0_30, %c0_31], %243 {strides = array<i32>} : memref<8x8x32xf32, #tpu.memory_space<vmem>>, vector<8x8x32xf32>,
    %c0_32 = arith.constant 0 : index
    %c0_33 = arith.constant 0 : index
    %245 = vector.load %arg9[%c0_32, %c0_33] : memref<8x32xf32, #tpu.memory_space<vmem>>, vector<8x32xf32>
    tpu.vector_store %arg9[%c0_32, %c0_33], %232 {strides = array<i32>} : memref<8x32xf32, #tpu.memory_space<vmem>>, vector<8x32xf32>,
    return
  }
  func.func @transform_0(%arg0: i32) -> (i32, i32) {
    %c0_i32 = arith.constant 0 : i32
    %c0_i32_0 = arith.constant 0 : i32
    return %arg0, %c0_i32 : i32, i32
  }
  func.func @transform_1(%arg0: i32) -> (i32, i32) {
    %c0_i32 = arith.constant 0 : i32
    %c0_i32_0 = arith.constant 0 : i32
    return %arg0, %c0_i32 : i32, i32
  }
  func.func @transform_2(%arg0: i32) -> (i32, i32) {
    %c0_i32 = arith.constant 0 : i32
    %c0_i32_0 = arith.constant 0 : i32
    return %arg0, %c0_i32 : i32, i32
  }
  func.func @transform_3(%arg0: i32) -> (i32, i32) {
    %c0_i32 = arith.constant 0 : i32
    %c0_i32_0 = arith.constant 0 : i32
    %c0_i32_1 = arith.constant 0 : i32
    return %c0_i32, %c0_i32_0 : i32, i32
  }
  func.func @transform_4(%arg0: i32) -> (i32, i32) {
    %c0_i32 = arith.constant 0 : i32
    %c0_i32_0 = arith.constant 0 : i32
    %c0_i32_1 = arith.constant 0 : i32
    return %c0_i32, %c0_i32_0 : i32, i32
  }
  func.func @transform_5(%arg0: i32) -> (i32, i32) {
    %c0_i32 = arith.constant 0 : i32
    %c0_i32_0 = arith.constant 0 : i32
    %c0_i32_1 = arith.constant 0 : i32
    return %c0_i32, %c0_i32_0 : i32, i32
  }
  func.func @transform_6(%arg0: i32) -> (i32, i32) {
    %c0_i32 = arith.constant 0 : i32
    %c0_i32_0 = arith.constant 0 : i32
    %c0_i32_1 = arith.constant 0 : i32
    return %c0_i32, %c0_i32_0 : i32, i32
  }
  func.func @transform_7(%arg0: i32) -> (i32, i32, i32) {
    %c0_i32 = arith.constant 0 : i32
    %c0_i32_0 = arith.constant 0 : i32
    %c0_i32_1 = arith.constant 0 : i32
    return %c0_i32, %arg0, %c0_i32_0 : i32, i32, i32
  }
  func.func @transform_8(%arg0: i32) -> (i32, i32) {
    %c0_i32 = arith.constant 0 : i32
    %c0_i32_0 = arith.constant 0 : i32
    return %arg0, %c0_i32 : i32, i32
  }
}

</mosaic_0001>

<llo_original>
// kernel: embedding_lstm_forward.1
$region0: #{embedding_lstm_forward.1}
  #allocation0 [shape = 'u32[]', space=smem, size = 0x4, offset = 0x4, fixed_abs, tag = 'smem constant byte address 0x4 - core index']
  #allocation1 [shape = 'u32[72,128]{1,0:T(1,128)}', space=vmem, size = 0x9000, scoped, tag = 'internal scratch']
  %s0 = inlined_call_operand.vmem [shape: f32[8,8], index: 0, kind: input, shape index: {}]
  %s1 = inlined_call_operand.vmem [shape: f32[8,8], index: 1, kind: input, shape index: {}]
  %s2 = inlined_call_operand.vmem [shape: f32[8,8], index: 2, kind: input, shape index: {}]
  %s3 = inlined_call_operand.vmem [shape: f32[2,128], index: 3, kind: input, shape index: {}]
  %s4 = inlined_call_operand.vmem [shape: f32[8,128], index: 4, kind: input, shape index: {}]
  %s5 = inlined_call_operand.vmem [shape: f32[32,128], index: 5, kind: input, shape index: {}]
  %s6 = inlined_call_operand.vmem [shape: f32[1,128], index: 6, kind: input, shape index: {}]
  %s7 = inlined_call_operand.vmem [shape: f32[8,8,32], index: 7, kind: output, shape index: {0}]
  %s8 = inlined_call_operand.vmem [shape: f32[8,32], index: 8, kind: output, shape index: {1}]
  %9 = xla_tuple %s7, %s8
  %s10 = sld [smem:[#allocation0]]
  $region46: #{embedding_lstm_forward.1} parent=0
    _
  %s12 = ssub.s32 1, %s10
  %s13 = scalar_select 0, %s12, %s10
  // Predicated region
  $region2: #{embedding_lstm_forward.1} parent=0 // pred_check
    _
  $region3: #{embedding_lstm_forward.1} parent=0 // pred_check_branch
    %15 = sbr.rel (0) target = $region5
  $region4: #{embedding_lstm_forward.1} parent=0 // pred_region
    _
  $region5: #{embedding_lstm_forward.1} parent=0 // pred_fallthru
    _
  // Predicated region
  $region6: #{embedding_lstm_forward.1} parent=0 // pred_check
    _
  $region7: #{embedding_lstm_forward.1} parent=0 // pred_check_branch
    %17 = sbr.rel (0) target = $region9
  $region8: #{embedding_lstm_forward.1} parent=0 // pred_region
    _
  $region9: #{embedding_lstm_forward.1} parent=0 // pred_fallthru
    _
  // Predicated region
  $region10: #{embedding_lstm_forward.1} parent=0 // pred_check
    _
  $region11: #{embedding_lstm_forward.1} parent=0 // pred_check_branch
    %19 = sbr.rel (0) target = $region13
  $region12: #{embedding_lstm_forward.1} parent=0 // pred_region
    _
  $region13: #{embedding_lstm_forward.1} parent=0 // pred_fallthru
    _
  // Predicated region
  $region14: #{embedding_lstm_forward.1} parent=0 // pred_check
    _
  $region15: #{embedding_lstm_forward.1} parent=0 // pred_check_branch
    %21 = sbr.rel (0) target = $region17
  $region16: #{embedding_lstm_forward.1} parent=0 // pred_region
    _
  $region17: #{embedding_lstm_forward.1} parent=0 // pred_fallthru
    _
  // Predicated region
  $region18: #{embedding_lstm_forward.1} parent=0 // pred_check
    _
  $region19: #{embedding_lstm_forward.1} parent=0 // pred_check_branch
    %23 = sbr.rel (0) target = $region21
  $region20: #{embedding_lstm_forward.1} parent=0 // pred_region
    _
  $region21: #{embedding_lstm_forward.1} parent=0 // pred_fallthru
    _
  // Predicated region
  $region22: #{embedding_lstm_forward.1} parent=0 // pred_check
    _
  $region23: #{embedding_lstm_forward.1} parent=0 // pred_check_branch
    %25 = sbr.rel (0) target = $region25
  $region24: #{embedding_lstm_forward.1} parent=0 // pred_region
    _
  $region25: #{embedding_lstm_forward.1} parent=0 // pred_fallthru
    _
  // Predicated region
  $region26: #{embedding_lstm_forward.1} parent=0 // pred_check
    _
  $region27: #{embedding_lstm_forward.1} parent=0 // pred_check_branch
    %27 = sbr.rel (0) target = $region29
  $region28: #{embedding_lstm_forward.1} parent=0 // pred_region
    _
  $region29: #{embedding_lstm_forward.1} parent=0 // pred_fallthru
    _
  %v28 = vld [vmem:[%s0] sm:$0xff]
  %v29 = vld [vmem:[%s1] sm:$0xff]
  %v30 = vld [vmem:[%s2] sm:$0xff]
  %v31 = vld [vmem:[%s3] sm:$0x3]
  %v32 = vld [vmem:[%s4] sm:$0xff]
  %v33 = vld [vmem:[%s5] sm:$0xff]
  %v34 = vld [vmem:[%s5 + $0x8] sm:$0xff]
  %v35 = vld [vmem:[%s5 + $0x10] sm:$0xff]
  %v36 = vld [vmem:[%s5 + $0x18] sm:$0xff]
  %v37 = vld [vmem:[%s6] sm:$0x1]
  %v39 = vperm.slane %v37, 0
  %vm41 = vcmask 64512
  %v43 = vsel %vm41, %v30, 0
  %45 = vmatpush.msra.mxu0 0.0
  %46 = vmatpush.msra.mxu0 0.0
  %47 = vmatpush.msra.mxu0 0.0
  %48 = vmatpush.msra.mxu0 0.0
  %49 = vmatpush.msra.mxu0 0.0
  %50 = vmatpush.msra.mxu0 0.0
  %51 = vmatpush.msra.mxu0 0.0
  %52 = vmatpush.msra.mxu0 0.0
  %53 = vmatpush.msra.mxu0 0.0
  %54 = vmatpush.msra.mxu0 0.0
  %55 = vmatpush.msra.mxu0 0.0
  %56 = vmatpush.msra.mxu0 0.0
  %57 = vmatpush.msra.mxu0 0.0
  %58 = vmatpush.msra.mxu0 0.0
  %59 = vmatpush.msra.mxu0 0.0
  %60 = vmatpush.msra.mxu0 %v32
  %61 = vmatmul.f32.gmra.mxu0 %v43
  %v62 = vpop.f32.mrf.mxu0
  %v63 = vadd.f32 %v39, %v62
  %64 = vdwg.mxu0
  %66 = vset.pattern.permute.xlu0 0
  %67 = vperm.xlu0 %66, %v28
  %v68 = vpop.permute.xlu0 %67
  %v70 = vperm.slane %v31, 0
  %v71 = vmul.f32 %v68, %v70
  %73 = vset.pattern.permute.xlu0 0
  %74 = vperm.xlu0 %73, %v29
  %v75 = vpop.permute.xlu0 %74
  %v77 = vperm.slane %v31, 1
  %v78 = vmul.f32 %v75, %v77
  %v79 = vadd.f32 %v71, %v78
  %v80 = vadd.f32 %v79, %v63
  %81 = vset.pattern.permute.xlu0 1
  %82 = vperm.xlu0 %81, %v28
  %v83 = vpop.permute.xlu0 %82
  %v85 = vmul.f32 %v83, %v70
  %86 = vset.pattern.permute.xlu0 1
  %87 = vperm.xlu0 %86, %v29
  %v88 = vpop.permute.xlu0 %87
  %v90 = vmul.f32 %v88, %v77
  %v91 = vadd.f32 %v85, %v90
  %v92 = vadd.f32 %v91, %v63
  %93 = vset.pattern.permute.xlu0 2
  %94 = vperm.xlu0 %93, %v28
  %v95 = vpop.permute.xlu0 %94
  %v97 = vmul.f32 %v95, %v70
  %98 = vset.pattern.permute.xlu0 2
  %99 = vperm.xlu0 %98, %v29
  %v100 = vpop.permute.xlu0 %99
  %v102 = vmul.f32 %v100, %v77
  %v103 = vadd.f32 %v97, %v102
  %v104 = vadd.f32 %v103, %v63
  %105 = vset.pattern.permute.xlu0 3
  %106 = vperm.xlu0 %105, %v28
  %v107 = vpop.permute.xlu0 %106
  %v109 = vmul.f32 %v107, %v70
  %110 = vset.pattern.permute.xlu0 3
  %111 = vperm.xlu0 %110, %v29
  %v112 = vpop.permute.xlu0 %111
  %v114 = vmul.f32 %v112, %v77
  %v115 = vadd.f32 %v109, %v114
  %v116 = vadd.f32 %v115, %v63
  %117 = vset.pattern.permute.xlu0 4
  %118 = vperm.xlu0 %117, %v28
  %v119 = vpop.permute.xlu0 %118
  %v121 = vmul.f32 %v119, %v70
  %122 = vset.pattern.permute.xlu0 4
  %123 = vperm.xlu0 %122, %v29
  %v124 = vpop.permute.xlu0 %123
  %v126 = vmul.f32 %v124, %v77
  %v127 = vadd.f32 %v121, %v126
  %v128 = vadd.f32 %v127, %v63
  %129 = vset.pattern.permute.xlu0 5
  %130 = vperm.xlu0 %129, %v28
  %v131 = vpop.permute.xlu0 %130
  %v133 = vmul.f32 %v131, %v70
  %134 = vset.pattern.permute.xlu0 5
  %135 = vperm.xlu0 %134, %v29
  %v136 = vpop.permute.xlu0 %135
  %v138 = vmul.f32 %v136, %v77
  %v139 = vadd.f32 %v133, %v138
  %v140 = vadd.f32 %v139, %v63
  %141 = vset.pattern.permute.xlu0 6
  %142 = vperm.xlu0 %141, %v28
  %v143 = vpop.permute.xlu0 %142
  %v145 = vmul.f32 %v143, %v70
  %146 = vset.pattern.permute.xlu0 6
  %147 = vperm.xlu0 %146, %v29
  %v148 = vpop.permute.xlu0 %147
  %v150 = vmul.f32 %v148, %v77
  %v151 = vadd.f32 %v145, %v150
  %v152 = vadd.f32 %v151, %v63
  %153 = vset.pattern.permute.xlu0 7
  %154 = vperm.xlu0 %153, %v28
  %v155 = vpop.permute.xlu0 %154
  %v157 = vmul.f32 %v155, %v70
  %158 = vset.pattern.permute.xlu0 7
  %159 = vperm.xlu0 %158, %v29
  %v160 = vpop.permute.xlu0 %159
  %v162 = vmul.f32 %v160, %v77
  %v163 = vadd.f32 %v157, %v162
  %v164 = vadd.f32 %v163, %v63
  %v165 = vxor.u32 %v80, 2147483648
  %v166 = vmul.f32 %v165, 1.442695
  %v167 = vpow.pop %v166
  %v168 = vadd.f32 %v167, 1.0
  %v169 = vrcp.pop %v168
  %v170 = vmul.f32 %v168, %v169
  %v171 = vsub.f32 1.0, %v170
  %v172 = vmul.f32 %v169, %v171
  %v173 = vadd.f32 %v169, %v172
  %vm174 = vweird.f32 %v168
  %vm175 = vweird.f32 %v169
  %vm176 = vmor %vm174, %vm175
  %v177 = vsel %vm176, %v169, %v173
  %v178 = vand.u32 2147483647, %v168
  %vm179 = vcmp.eq.f32.partialorder %v178, 8.507059e+37
  %v180 = vand.u32 %v168, 2147483648
  %v181 = vor.u32 1.1754944e-38, %v180
  %v182 = vsel %vm179, %v181, %v177
  %v183 = vmul.f32 1.0, %v182
  %v184 = vtanh.pop %v80
  %v185 = vmul.f32 %v183, 0.0
  %187 = vrot.lane.b32.xlu0 %v184, 64
  %v188 = vpop.permute.xlu0 %187
  %v190 = vmul.f32 %v183, %v188
  %192 = vrot.lane.b32.xlu0 %v190, 96
  %v193 = vpop.permute.xlu0 %192
  %v195 = vadd.f32 %v185, %v193
  %v196 = vtanh.pop %v195
  %198 = vrot.lane.b32.xlu0 %v196, 64
  %v199 = vpop.permute.xlu0 %198
  %v201 = vmul.f32 %v183, %v199
  %203 = vrot.lane.b32.xlu0 %v201, 64
  %v204 = vpop.permute.xlu0 %203
  %vm205 = vcmask 261120
  %v206 = vsel %vm205, %v204, 0
  %208 = vmatpush.msra.mxu0 0.0
  %209 = vmatpush.msra.mxu0 0.0
  %210 = vmatpush.msra.mxu0 0.0
  %211 = vmatpush.msra.mxu0 0.0
  %212 = vmatpush.msra.mxu0 0.0
  %213 = vmatpush.msra.mxu0 0.0
  %214 = vmatpush.msra.mxu0 0.0
  %215 = vmatpush.msra.mxu0 0.0
  %216 = vmatpush.msra.mxu0 0.0
  %217 = vmatpush.msra.mxu0 0.0
  %218 = vmatpush.msra.mxu0 0.0
  %219 = vmatpush.msra.mxu0 0.0
  %220 = vmatpush.msra.mxu0 %v36
  %221 = vmatpush.msra.mxu0 %v35
  %222 = vmatpush.msra.mxu0 %v34
  %223 = vmatpush.msra.mxu0 %v33
  %224 = vmatmul.f32.gmra.mxu0 %v206
  %v225 = vpop.f32.mrf.mxu0
  %v226 = vadd.f32 0.0, %v225
  %227 = vdwg.mxu0
  %v228 = vadd.f32 %v92, %v226
  %v229 = vxor.u32 %v228, 2147483648
  %v230 = vmul.f32 %v229, 1.442695
  %v231 = vpow.pop %v230
  %v232 = vadd.f32 %v231, 1.0
  %v233 = vrcp.pop %v232
  %v234 = vmul.f32 %v232, %v233
  %v235 = vsub.f32 1.0, %v234
  %v236 = vmul.f32 %v233, %v235
  %v237 = vadd.f32 %v233, %v236
  %vm238 = vweird.f32 %v232
  %vm239 = vweird.f32 %v233
  %vm240 = vmor %vm238, %vm239
  %v241 = vsel %vm240, %v233, %v237
  %v242 = vand.u32 2147483647, %v232
  %vm243 = vcmp.eq.f32.partialorder %v242, 8.507059e+37
  %v244 = vand.u32 %v232, 2147483648
  %v245 = vor.u32 1.1754944e-38, %v244
  %v246 = vsel %vm243, %v245, %v241
  %v247 = vmul.f32 1.0, %v246
  %v248 = vtanh.pop %v228
  %v249 = vmul.f32 %v195, %v247
  %251 = vrot.lane.b32.xlu0 %v248, 64
  %v252 = vpop.permute.xlu0 %251
  %v254 = vmul.f32 %v247, %v252
  %256 = vrot.lane.b32.xlu0 %v254, 96
  %v257 = vpop.permute.xlu0 %256
  %v259 = vadd.f32 %v249, %v257
  %v260 = vtanh.pop %v259
  %262 = vrot.lane.b32.xlu0 %v260, 64
  %v263 = vpop.permute.xlu0 %262
  %v265 = vmul.f32 %v247, %v263
  %267 = vrot.lane.b32.xlu0 %v265, 64
  %v268 = vpop.permute.xlu0 %267
  %v269 = vsel %vm205, %v268, 0
  %271 = vmatpush.msra.mxu0 0.0
  %272 = vmatpush.msra.mxu0 0.0
  %273 = vmatpush.msra.mxu0 0.0
  %274 = vmatpush.msra.mxu0 0.0
  %275 = vmatpush.msra.mxu0 0.0
  %276 = vmatpush.msra.mxu0 0.0
  %277 = vmatpush.msra.mxu0 0.0
  %278 = vmatpush.msra.mxu0 0.0
  %279 = vmatpush.msra.mxu0 0.0
  %280 = vmatpush.msra.mxu0 0.0
  %281 = vmatpush.msra.mxu0 0.0
  %282 = vmatpush.msra.mxu0 0.0
  %283 = vmatpush.msra.mxu0 %v36
  %284 = vmatpush.msra.mxu0 %v35
  %285 = vmatpush.msra.mxu0 %v34
  %286 = vmatpush.msra.mxu0 %v33
  %287 = vmatmul.f32.gmra.mxu0 %v269
  %v288 = vpop.f32.mrf.mxu0
  %v289 = vadd.f32 0.0, %v288
  %290 = vdwg.mxu0
  %v291 = vadd.f32 %v104, %v289
  %v292 = vxor.u32 %v291, 2147483648
  %v293 = vmul.f32 %v292, 1.442695
  %v294 = vpow.pop %v293
  %v295 = vadd.f32 %v294, 1.0
  %v296 = vrcp.pop %v295
  %v297 = vmul.f32 %v295, %v296
  %v298 = vsub.f32 1.0, %v297
  %v299 = vmul.f32 %v296, %v298
  %v300 = vadd.f32 %v296, %v299
  %vm301 = vweird.f32 %v295
  %vm302 = vweird.f32 %v296
  %vm303 = vmor %vm301, %vm302
  %v304 = vsel %vm303, %v296, %v300
  %v305 = vand.u32 2147483647, %v295
  %vm306 = vcmp.eq.f32.partialorder %v305, 8.507059e+37
  %v307 = vand.u32 %v295, 2147483648
  %v308 = vor.u32 1.1754944e-38, %v307
  %v309 = vsel %vm306, %v308, %v304
  %v310 = vmul.f32 1.0, %v309
  %v311 = vtanh.pop %v291
  %v312 = vmul.f32 %v259, %v310
  %314 = vrot.lane.b32.xlu0 %v311, 64
  %v315 = vpop.permute.xlu0 %314
  %v317 = vmul.f32 %v310, %v315
  %319 = vrot.lane.b32.xlu0 %v317, 96
  %v320 = vpop.permute.xlu0 %319
  %v322 = vadd.f32 %v312, %v320
  %v323 = vtanh.pop %v322
  %325 = vrot.lane.b32.xlu0 %v323, 64
  %v326 = vpop.permute.xlu0 %325
  %v328 = vmul.f32 %v310, %v326
  %330 = vrot.lane.b32.xlu0 %v328, 64
  %v331 = vpop.permute.xlu0 %330
  %v332 = vsel %vm205, %v331, 0
  %334 = vmatpush.msra.mxu0 0.0
  %335 = vmatpush.msra.mxu0 0.0
  %336 = vmatpush.msra.mxu0 0.0
  %337 = vmatpush.msra.mxu0 0.0
  %338 = vmatpush.msra.mxu0 0.0
  %339 = vmatpush.msra.mxu0 0.0
  %340 = vmatpush.msra.mxu0 0.0
  %341 = vmatpush.msra.mxu0 0.0
  %342 = vmatpush.msra.mxu0 0.0
  %343 = vmatpush.msra.mxu0 0.0
  %344 = vmatpush.msra.mxu0 0.0
  %345 = vmatpush.msra.mxu0 0.0
  %346 = vmatpush.msra.mxu0 %v36
  %347 = vmatpush.msra.mxu0 %v35
  %348 = vmatpush.msra.mxu0 %v34
  %349 = vmatpush.msra.mxu0 %v33
  %350 = vmatmul.f32.gmra.mxu0 %v332
  %v351 = vpop.f32.mrf.mxu0
  %v352 = vadd.f32 0.0, %v351
  %353 = vdwg.mxu0
  %v354 = vadd.f32 %v116, %v352
  %v355 = vxor.u32 %v354, 2147483648
  %v356 = vmul.f32 %v355, 1.442695
  %v357 = vpow.pop %v356
  %v358 = vadd.f32 %v357, 1.0
  %v359 = vrcp.pop %v358
  %v360 = vmul.f32 %v358, %v359
  %v361 = vsub.f32 1.0, %v360
  %v362 = vmul.f32 %v359, %v361
  %v363 = vadd.f32 %v359, %v362
  %vm364 = vweird.f32 %v358
  %vm365 = vweird.f32 %v359
  %vm366 = vmor %vm364, %vm365
  %v367 = vsel %vm366, %v359, %v363
  %v368 = vand.u32 2147483647, %v358
  %vm369 = vcmp.eq.f32.partialorder %v368, 8.507059e+37
  %v370 = vand.u32 %v358, 2147483648
  %v371 = vor.u32 1.1754944e-38, %v370
  %v372 = vsel %vm369, %v371, %v367
  %v373 = vmul.f32 1.0, %v372
  %v374 = vtanh.pop %v354
  %v375 = vmul.f32 %v322, %v373
  %377 = vrot.lane.b32.xlu0 %v374, 64
  %v378 = vpop.permute.xlu0 %377
  %v380 = vmul.f32 %v373, %v378
  %382 = vrot.lane.b32.xlu0 %v380, 96
  %v383 = vpop.permute.xlu0 %382
  %v385 = vadd.f32 %v375, %v383
  %v386 = vtanh.pop %v385
  %388 = vrot.lane.b32.xlu0 %v386, 64
  %v389 = vpop.permute.xlu0 %388
  %v391 = vmul.f32 %v373, %v389
  %393 = vrot.lane.b32.xlu0 %v391, 64
  %v394 = vpop.permute.xlu0 %393
  %v395 = vsel %vm205, %v394, 0
  %397 = vmatpush.msra.mxu0 0.0
  %398 = vmatpush.msra.mxu0 0.0
  %399 = vmatpush.msra.mxu0 0.0
  %400 = vmatpush.msra.mxu0 0.0
  %401 = vmatpush.msra.mxu0 0.0
  %402 = vmatpush.msra.mxu0 0.0
  %403 = vmatpush.msra.mxu0 0.0
  %404 = vmatpush.msra.mxu0 0.0
  %405 = vmatpush.msra.mxu0 0.0
  %406 = vmatpush.msra.mxu0 0.0
  %407 = vmatpush.msra.mxu0 0.0
  %408 = vmatpush.msra.mxu0 0.0
  %409 = vmatpush.msra.mxu0 %v36
  %410 = vmatpush.msra.mxu0 %v35
  %411 = vmatpush.msra.mxu0 %v34
  %412 = vmatpush.msra.mxu0 %v33
  %413 = vmatmul.f32.gmra.mxu0 %v395
  %v414 = vpop.f32.mrf.mxu0
  %v415 = vadd.f32 0.0, %v414
  %416 = vdwg.mxu0
  %v417 = vadd.f32 %v128, %v415
  %v418 = vxor.u32 %v417, 2147483648
  %v419 = vmul.f32 %v418, 1.442695
  %v420 = vpow.pop %v419
  %v421 = vadd.f32 %v420, 1.0
  %v422 = vrcp.pop %v421
  %v423 = vmul.f32 %v421, %v422
  %v424 = vsub.f32 1.0, %v423
  %v425 = vmul.f32 %v422, %v424
  %v426 = vadd.f32 %v422, %v425
  %vm427 = vweird.f32 %v421
  %vm428 = vweird.f32 %v422
  %vm429 = vmor %vm427, %vm428
  %v430 = vsel %vm429, %v422, %v426
  %v431 = vand.u32 2147483647, %v421
  %vm432 = vcmp.eq.f32.partialorder %v431, 8.507059e+37
  %v433 = vand.u32 %v421, 2147483648
  %v434 = vor.u32 1.1754944e-38, %v433
  %v435 = vsel %vm432, %v434, %v430
  %v436 = vmul.f32 1.0, %v435
  %v437 = vtanh.pop %v417
  %v438 = vmul.f32 %v385, %v436
  %440 = vrot.lane.b32.xlu0 %v437, 64
  %v441 = vpop.permute.xlu0 %440
  %v443 = vmul.f32 %v436, %v441
  %445 = vrot.lane.b32.xlu0 %v443, 96
  %v446 = vpop.permute.xlu0 %445
  %v448 = vadd.f32 %v438, %v446
  %v449 = vtanh.pop %v448
  %451 = vrot.lane.b32.xlu0 %v449, 64
  %v452 = vpop.permute.xlu0 %451
  %v454 = vmul.f32 %v436, %v452
  %456 = vrot.lane.b32.xlu0 %v454, 64
  %v457 = vpop.permute.xlu0 %456
  %v458 = vsel %vm205, %v457, 0
  %460 = vmatpush.msra.mxu0 0.0
  %461 = vmatpush.msra.mxu0 0.0
  %462 = vmatpush.msra.mxu0 0.0
  %463 = vmatpush.msra.mxu0 0.0
  %464 = vmatpush.msra.mxu0 0.0
  %465 = vmatpush.msra.mxu0 0.0
  %466 = vmatpush.msra.mxu0 0.0
  %467 = vmatpush.msra.mxu0 0.0
  %468 = vmatpush.msra.mxu0 0.0
  %469 = vmatpush.msra.mxu0 0.0
  %470 = vmatpush.msra.mxu0 0.0
  %471 = vmatpush.msra.mxu0 0.0
  %472 = vmatpush.msra.mxu0 %v36
  %473 = vmatpush.msra.mxu0 %v35
  %474 = vmatpush.msra.mxu0 %v34
  %475 = vmatpush.msra.mxu0 %v33
  %476 = vmatmul.f32.gmra.mxu0 %v458
  %v477 = vpop.f32.mrf.mxu0
  %v478 = vadd.f32 0.0, %v477
  %479 = vdwg.mxu0
  %v480 = vadd.f32 %v140, %v478
  %v481 = vxor.u32 %v480, 2147483648
  %v482 = vmul.f32 %v481, 1.442695
  %v483 = vpow.pop %v482
  %v484 = vadd.f32 %v483, 1.0
  %v485 = vrcp.pop %v484
  %v486 = vmul.f32 %v484, %v485
  %v487 = vsub.f32 1.0, %v486
  %v488 = vmul.f32 %v485, %v487
  %v489 = vadd.f32 %v485, %v488
  %vm490 = vweird.f32 %v484
  %vm491 = vweird.f32 %v485
  %vm492 = vmor %vm490, %vm491
  %v493 = vsel %vm492, %v485, %v489
  %v494 = vand.u32 2147483647, %v484
  %vm495 = vcmp.eq.f32.partialorder %v494, 8.507059e+37
  %v496 = vand.u32 %v484, 2147483648
  %v497 = vor.u32 1.1754944e-38, %v496
  %v498 = vsel %vm495, %v497, %v493
  %v499 = vmul.f32 1.0, %v498
  %v500 = vtanh.pop %v480
  %v501 = vmul.f32 %v448, %v499
  %503 = vrot.lane.b32.xlu0 %v500, 64
  %v504 = vpop.permute.xlu0 %503
  %v506 = vmul.f32 %v499, %v504
  %508 = vrot.lane.b32.xlu0 %v506, 96
  %v509 = vpop.permute.xlu0 %508
  %v511 = vadd.f32 %v501, %v509
  %v512 = vtanh.pop %v511
  %514 = vrot.lane.b32.xlu0 %v512, 64
  %v515 = vpop.permute.xlu0 %514
  %v517 = vmul.f32 %v499, %v515
  %519 = vrot.lane.b32.xlu0 %v517, 64
  %v520 = vpop.permute.xlu0 %519
  %v521 = vsel %vm205, %v520, 0
  %523 = vmatpush.msra.mxu0 0.0
  %524 = vmatpush.msra.mxu0 0.0
  %525 = vmatpush.msra.mxu0 0.0
  %526 = vmatpush.msra.mxu0 0.0
  %527 = vmatpush.msra.mxu0 0.0
  %528 = vmatpush.msra.mxu0 0.0
  %529 = vmatpush.msra.mxu0 0.0
  %530 = vmatpush.msra.mxu0 0.0
  %531 = vmatpush.msra.mxu0 0.0
  %532 = vmatpush.msra.mxu0 0.0
  %533 = vmatpush.msra.mxu0 0.0
  %534 = vmatpush.msra.mxu0 0.0
  %535 = vmatpush.msra.mxu0 %v36
  %536 = vmatpush.msra.mxu0 %v35
  %537 = vmatpush.msra.mxu0 %v34
  %538 = vmatpush.msra.mxu0 %v33
  %539 = vmatmul.f32.gmra.mxu0 %v521
  %v540 = vpop.f32.mrf.mxu0
  %v541 = vadd.f32 0.0, %v540
  %542 = vdwg.mxu0
  %v543 = vadd.f32 %v152, %v541
  %v544 = vxor.u32 %v543, 2147483648
  %v545 = vmul.f32 %v544, 1.442695
  %v546 = vpow.pop %v545
  %v547 = vadd.f32 %v546, 1.0
  %v548 = vrcp.pop %v547
  %v549 = vmul.f32 %v547, %v548
  %v550 = vsub.f32 1.0, %v549
  %v551 = vmul.f32 %v548, %v550
  %v552 = vadd.f32 %v548, %v551
  %vm553 = vweird.f32 %v547
  %vm554 = vweird.f32 %v548
  %vm555 = vmor %vm553, %vm554
  %v556 = vsel %vm555, %v548, %v552
  %v557 = vand.u32 2147483647, %v547
  %vm558 = vcmp.eq.f32.partialorder %v557, 8.507059e+37
  %v559 = vand.u32 %v547, 2147483648
  %v560 = vor.u32 1.1754944e-38, %v559
  %v561 = vsel %vm558, %v560, %v556
  %v562 = vmul.f32 1.0, %v561
  %v563 = vtanh.pop %v543
  %v564 = vmul.f32 %v511, %v562
  %566 = vrot.lane.b32.xlu0 %v563, 64
  %v567 = vpop.permute.xlu0 %566
  %v569 = vmul.f32 %v562, %v567
  %571 = vrot.lane.b32.xlu0 %v569, 96
  %v572 = vpop.permute.xlu0 %571
  %v574 = vadd.f32 %v564, %v572
  %v575 = vtanh.pop %v574
  %577 = vrot.lane.b32.xlu0 %v575, 64
  %v578 = vpop.permute.xlu0 %577
  %v580 = vmul.f32 %v562, %v578
  %582 = vrot.lane.b32.xlu0 %v580, 64
  %v583 = vpop.permute.xlu0 %582
  %v584 = vsel %vm205, %v583, 0
  %586 = vmatpush.msra.mxu0 0.0
  %587 = vmatpush.msra.mxu0 0.0
  %588 = vmatpush.msra.mxu0 0.0
  %589 = vmatpush.msra.mxu0 0.0
  %590 = vmatpush.msra.mxu0 0.0
  %591 = vmatpush.msra.mxu0 0.0
  %592 = vmatpush.msra.mxu0 0.0
  %593 = vmatpush.msra.mxu0 0.0
  %594 = vmatpush.msra.mxu0 0.0
  %595 = vmatpush.msra.mxu0 0.0
  %596 = vmatpush.msra.mxu0 0.0
  %597 = vmatpush.msra.mxu0 0.0
  %598 = vmatpush.msra.mxu0 %v36
  %599 = vmatpush.msra.mxu0 %v35
  %600 = vmatpush.msra.mxu0 %v34
  %601 = vmatpush.msra.mxu0 %v33
  %602 = vmatmul.f32.gmra.mxu0 %v584
  %v603 = vpop.f32.mrf.mxu0
  %v604 = vadd.f32 0.0, %v603
  %605 = vdwg.mxu0
  %v606 = vadd.f32 %v164, %v604
  %v607 = vxor.u32 %v606, 2147483648
  %v608 = vmul.f32 %v607, 1.442695
  %v609 = vpow.pop %v608
  %v610 = vadd.f32 %v609, 1.0
  %v611 = vrcp.pop %v610
  %v612 = vmul.f32 %v610, %v611
  %v613 = vsub.f32 1.0, %v612
  %v614 = vmul.f32 %v611, %v613
  %v615 = vadd.f32 %v611, %v614
  %vm616 = vweird.f32 %v610
  %vm617 = vweird.f32 %v611
  %vm618 = vmor %vm616, %vm617
  %v619 = vsel %vm618, %v611, %v615
  %v620 = vand.u32 2147483647, %v610
  %vm621 = vcmp.eq.f32.partialorder %v620, 8.507059e+37
  %v622 = vand.u32 %v610, 2147483648
  %v623 = vor.u32 1.1754944e-38, %v622
  %v624 = vsel %vm621, %v623, %v619
  %v625 = vmul.f32 1.0, %v624
  %v626 = vtanh.pop %v606
  %v627 = vmul.f32 %v574, %v625
  %629 = vrot.lane.b32.xlu0 %v626, 64
  %v630 = vpop.permute.xlu0 %629
  %v632 = vmul.f32 %v625, %v630
  %634 = vrot.lane.b32.xlu0 %v632, 96
  %v635 = vpop.permute.xlu0 %634
  %v637 = vadd.f32 %v627, %v635
  %v638 = vtanh.pop %v637
  %640 = vrot.lane.b32.xlu0 %v638, 64
  %v641 = vpop.permute.xlu0 %640
  %v643 = vmul.f32 %v625, %v641
  %645 = vrot.lane.b32.xlu0 %v643, 64
  %v646 = vpop.permute.xlu0 %645
  %655 = vst.msk [vmem:[%s7] sm:$0xff] %vm205, %v204
  %656 = vst.msk [vmem:[%s7 + $0x8] sm:$0xff] %vm205, %v268
  %657 = vst.msk [vmem:[%s7 + $0x10] sm:$0xff] %vm205, %v331
  %658 = vst.msk [vmem:[%s7 + $0x18] sm:$0xff] %vm205, %v394
  %659 = vst.msk [vmem:[%s7 + $0x20] sm:$0xff] %vm205, %v457
  %660 = vst.msk [vmem:[%s7 + $0x28] sm:$0xff] %vm205, %v520
  %661 = vst.msk [vmem:[%s7 + $0x30] sm:$0xff] %vm205, %v583
  %662 = vst.msk [vmem:[%s7 + $0x38] sm:$0xff] %vm205, %v646
  %663 = vst.msk [vmem:[%s8] sm:$0xff] %vm205, %v637
  // Predicated region
  $region30: #{embedding_lstm_forward.1} parent=0 // pred_check
    _
  $region31: #{embedding_lstm_forward.1} parent=0 // pred_check_branch
    %665 = sbr.rel (0) target = $region33
  $region32: #{embedding_lstm_forward.1} parent=0 // pred_region
    _
  $region33: #{embedding_lstm_forward.1} parent=0 // pred_fallthru
    _
  // Predicated region
  $region34: #{embedding_lstm_forward.1} parent=0 // pred_check
    _
  $region35: #{embedding_lstm_forward.1} parent=0 // pred_check_branch
    %667 = sbr.rel (0) target = $region37
  $region36: #{embedding_lstm_forward.1} parent=0 // pred_region
    _
  $region37: #{embedding_lstm_forward.1} parent=0 // pred_fallthru
    _
  // Predicated region
  $region38: #{embedding_lstm_forward.1} parent=0 // pred_check
    _
  $region39: #{embedding_lstm_forward.1} parent=0 // pred_check_branch
    %669 = sbr.rel (0) target = $region41
  $region40: #{embedding_lstm_forward.1} parent=0 // pred_region
    _
  $region41: #{embedding_lstm_forward.1} parent=0 // pred_fallthru
    _
  // Predicated region
  $region42: #{embedding_lstm_forward.1} parent=0 // pred_check
    _
  $region43: #{embedding_lstm_forward.1} parent=0 // pred_check_branch
    %671 = sbr.rel (0) target = $region45
  $region44: #{embedding_lstm_forward.1} parent=0 // pred_region
    _
  $region45: #{embedding_lstm_forward.1} parent=0 // pred_fallthru
    _

</llo_original>
